<compile_context>
chip_gen: v5e
topology: v5e:2x2
jax: 0.10.0
libtpu: 0.0.40
codegen_flags: <defaults>
</compile_context>

<pallas_src>
import functools

import jax
import jax.numpy as jnp
from jax.experimental import pallas as pl
from jax.experimental.pallas import tpu as pltpu

CFG = {"num_adapters": 2, "d": 0}   # synthetic stand-in for the external cfg


# ---------------------------------------------------------------------------
# Pallas kernel: pooling + domain softmax + fused SE MLPs + gated multiply
# One grid step handles one (batch block, spatial group) slab of x.
# ---------------------------------------------------------------------------
def domain_attention_kernel(x_ref, w1p_ref, b1p_ref, w2p_ref, b2_ref,
                            fcw_ref, fcb_ref, o_ref, *, n_adapters, hidden):
    Bb, C, S = x_ref.shape            # block: (Bb, C, S), S on the lane axis

    # -- squeeze: global average pool over the spatial (lane) axis, f32 accum.
    pooled = jnp.sum(x_ref[...].astype(jnp.float32), axis=-1) * (1.0 / S)  # (Bb, C)

    # -- domain-attention weights: softmax(fc_1(pooled)) per (batch, group).
    logits = jnp.dot(pooled, fcw_ref[...],
                     preferred_element_type=jnp.float32) + fcb_ref[...]
    w = jax.nn.softmax(logits, axis=-1)                            # (Bb, n)

    # -- all adapters' SE first layers fused into ONE matmul.
    h = jnp.maximum(
        jnp.dot(pooled, w1p_ref[...], preferred_element_type=jnp.float32)
        + b1p_ref[...], 0.0)                                       # (Bb, n*hidden)

    # -- scale each adapter's hidden block by its domain weight (no expand
    #    matmul: just a lane broadcast + concat of n tiny pieces).
    w_exp = jnp.concatenate(
        [jnp.broadcast_to(w[:, i:i + 1], (Bb, hidden)) for i in range(n_adapters)],
        axis=1)                                                    # (Bb, n*hidden)

    # -- second SE layer (fused) + weighted bias mix, then the sigmoid gate.
    y = (jnp.dot(h * w_exp, w2p_ref[...], preferred_element_type=jnp.float32)
         + jnp.dot(w, b2_ref[...], preferred_element_type=jnp.float32))   # (Bb, C)
    gate = jax.nn.sigmoid(y)                                       # (Bb, C) f32

    # -- excite: one vectorized broadcast multiply over the whole block.
    o_ref[...] = (x_ref[...] * gate[:, :, None]).astype(o_ref.dtype)


# ---------------------------------------------------------------------------
# Wrapper: free reshapes, weight packing, chip-aware block sizing, pallas_call
# ---------------------------------------------------------------------------
@functools.partial(jax.jit, static_argnames=("groups",))
def domain_attention(x, params, groups):
    B, C, D, H, W = x.shape
    if D % groups:
        raise ValueError("depth must be divisible by groups")
    S = (D // groups) * H * W
    n_adapters, _, hidden = params["w1"].shape
    nh = n_adapters * hidden

    # Free, contiguous reshape (no HBM transpose): NCDHW -> (B, C, D*H*W);
    # the g-th spatial group is the contiguous lane range [g*S, (g+1)*S).
    x_r = x.reshape(B, C, groups * S)

    # --- pack the tiny SE / fc weights once (host/XLA side) ----------------
    w1p = jnp.transpose(params["w1"], (1, 0, 2)).reshape(C, nh)    # (C, n*hidden)
    b1p = params["b1"].reshape(1, nh)                              # (1, n*hidden)
    w2p = params["w2"].reshape(nh, C)                              # (n*hidden, C)
    b2 = params["b2"]                                              # (n, C)
    fcw = params["fc1_w"]                                          # (C, n)
    fcb = params["fc1_b"]                                          # (1, n)
    param_arrays = (w1p, b1p, w2p, b2, fcw, fcb)
    param_bytes = sum(int(a.size) * a.dtype.itemsize for a in param_arrays)

    # --- chip-aware block sizing --------------------------------------------
    try:
        vmem_cap = int(pltpu.get_tpu_info().vmem_capacity_bytes)
    except Exception:
        vmem_cap = 64 << 20                     # unknown -> conservative path
    small_vmem = vmem_cap <= (64 << 20)         # v7x-class (64 MiB / core)

    bytes_per_bg = C * S * x.dtype.itemsize     # one (batch, group) row of x
    target_block = (6 << 20) if small_vmem else (12 << 20)
    Bb = max(1, min(B, target_block // max(1, bytes_per_bg)))
    if small_vmem:
        # keep >= ~8 grid steps so both v7x cores get a pipelined stream
        want_nb = max(1, -(-8 // groups))       # ceil(8 / groups)
        if B >= want_nb:
            Bb = min(Bb, B // want_nb)
    while B % Bb:                               # make Bb divide B
        Bb -= 1
    nb = B // Bb
    block_bytes = Bb * bytes_per_bg
    vmem_cap_limit = (48 << 20) if small_vmem else (96 << 20)
    vmem_limit = int(min(max(4 * block_bytes + param_bytes + (4 << 20), 16 << 20),
                         vmem_cap_limit))

    # --- cost hint for XLA's scheduler --------------------------------------
    M = B * groups
    flops = int(2 * M * C * (2 * nh + 2 * n_adapters) + 3 * x.size)
    transcendentals = int(M * (n_adapters + C))
    bytes_accessed = int(2 * x.size * x.dtype.itemsize + param_bytes)
    cost = pl.CostEstimate(flops=flops, transcendentals=transcendentals,
                           bytes_accessed=bytes_accessed)

    kernel = functools.partial(domain_attention_kernel,
                               n_adapters=n_adapters, hidden=hidden)

    def pspec(a):
        return pl.BlockSpec(a.shape, lambda i, g: (0, 0))

    out = pl.pallas_call(
        kernel,
        out_shape=jax.ShapeDtypeStruct((B, C, groups * S), x.dtype),
        grid=(nb, groups),
        in_specs=[
            pl.BlockSpec((Bb, C, S), lambda i, g: (i, 0, g)),
            pspec(w1p), pspec(b1p), pspec(w2p), pspec(b2),
            pspec(fcw), pspec(fcb),
        ],
        out_specs=pl.BlockSpec((Bb, C, S), lambda i, g: (i, 0, g)),
        compiler_params=pltpu.CompilerParams(
            dimension_semantics=("parallel", "parallel"),
            vmem_limit_bytes=vmem_limit),
        cost_estimate=cost,
    )(x_r, w1p, b1p, w2p, b2, fcw, fcb)

    # inverse free reshape back to NCDHW
    return out.reshape(B, C, D, H, W)


# ---------------------------------------------------------------------------
# Pure-JAX reference (mirrors the PyTorch forward directly, NCDHW)
# ---------------------------------------------------------------------------
def domain_attention_ref(x, params, groups):
    B, C, D, H, W = x.shape
    Dg = D // groups
    n_adapters = params["w1"].shape[0]
    outs = []
    for g in range(groups):
        xg = x[:, :, g * Dg:(g + 1) * Dg]                 # (B, C, Dg, H, W)
        s = xg.mean(axis=(2, 3, 4))                       # (B, C)
        logits = s @ params["fc1_w"] + params["fc1_b"][0]
        w = jax.nn.softmax(logits, axis=1)                # (B, n)
        ys = []
        for i in range(n_adapters):
            h = jax.nn.relu(s @ params["w1"][i] + params["b1"][i])
            ys.append(h @ params["w2"][i] + params["b2"][i])
        y_stack = jnp.stack(ys, axis=2)                   # (B, C, n)
        y = jnp.einsum("bcn,bn->bc", y_stack, w)
        gate = jax.nn.sigmoid(y)
        outs.append(xg * gate[:, :, None, None, None])
    return jnp.concatenate(outs, axis=2)


# ---------------------------------------------------------------------------
# Deterministic parameter construction (synthetic; no checkpoint load)
# ---------------------------------------------------------------------------
def make_params(key, planes, reduction, n_adapters):
    hidden = planes // reduction
    ks = jax.random.split(key, 6)
    return {
        "w1":    0.1 * jax.random.normal(ks[0], (n_adapters, planes, hidden), jnp.float32),
        "b1":    0.1 * jax.random.normal(ks[1], (n_adapters, hidden), jnp.float32),
        "w2":    0.1 * jax.random.normal(ks[2], (n_adapters, hidden, planes), jnp.float32),
        "b2":    0.1 * jax.random.normal(ks[3], (n_adapters, planes), jnp.float32),
        "fc1_w": 0.1 * jax.random.normal(ks[4], (planes, n_adapters), jnp.float32),
        "fc1_b": 0.1 * jax.random.normal(ks[5], (1, n_adapters), jnp.float32),
    }


if __name__ == "__main__":
    B, C, D, H, W = 2, 32, 8, 8, 8       # planes = 32; S = 4*8*8 = 256 (lane-aligned)
    groups = 2
    reduction = 4                         # hidden = 8
    n_adapters = CFG["num_adapters"]      # n_datasets = 2

    key = jax.random.PRNGKey(0)
    kx, kp = jax.random.split(key)
    x = jax.random.normal(kx, (B, C, D, H, W), jnp.float32)
    params = make_params(kp, C, reduction, n_adapters)

    out = domain_attention(x, params, groups=groups)
    out = jax.block_until_ready(out)

    ref = domain_attention_ref(x, params, groups)
    assert out.shape == x.shape
    assert jnp.allclose(out, ref, atol=1e-5, rtol=1e-5), "mismatch vs reference"

    print("KERNEL_OK")
</pallas_src>

<mosaic_0001>
module attributes {stable_mosaic.version = 11 : i64} {
  func.func @domain_attention_kernel(%arg0: i32, %arg1: i32, %arg2: memref<2x32x256xf32, #tpu.memory_space<vmem>>, %arg3: memref<32x16xf32, #tpu.memory_space<vmem>>, %arg4: memref<1x16xf32, #tpu.memory_space<vmem>>, %arg5: memref<16x32xf32, #tpu.memory_space<vmem>>, %arg6: memref<2x32xf32, #tpu.memory_space<vmem>>, %arg7: memref<32x2xf32, #tpu.memory_space<vmem>>, %arg8: memref<1x2xf32, #tpu.memory_space<vmem>>, %arg9: memref<2x32x256xf32, #tpu.memory_space<vmem>>) attributes {dimension_semantics = [#tpu.dimension_semantics<parallel>, #tpu.dimension_semantics<parallel>], iteration_bounds = array<i64: 1, 2>, scalar_prefetch = 0 : i64, scratch_operands = 0 : i64, tpu.core_type = #tpu.core_type<tc>, window_params = [{transform_indices = @transform_0, window_bounds = array<i64: 2, 32, 256>}, {pipeline_mode = #tpu.pipeline_mode<synchronous>, transform_indices = @transform_1, window_bounds = array<i64: 32, 16>}, {pipeline_mode = #tpu.pipeline_mode<synchronous>, transform_indices = @transform_2, window_bounds = array<i64: 1, 16>}, {pipeline_mode = #tpu.pipeline_mode<synchronous>, transform_indices = @transform_3, window_bounds = array<i64: 16, 32>}, {pipeline_mode = #tpu.pipeline_mode<synchronous>, transform_indices = @transform_4, window_bounds = array<i64: 2, 32>}, {pipeline_mode = #tpu.pipeline_mode<synchronous>, transform_indices = @transform_5, window_bounds = array<i64: 32, 2>}, {pipeline_mode = #tpu.pipeline_mode<synchronous>, transform_indices = @transform_6, window_bounds = array<i64: 1, 2>}, {transform_indices = @transform_7, window_bounds = array<i64: 2, 32, 256>}]} {
    %c0 = arith.constant 0 : index
    %c0_0 = arith.constant 0 : index
    %c0_1 = arith.constant 0 : index
    %0 = vector.load %arg2[%c0, %c0_0, %c0_1] : memref<2x32x256xf32, #tpu.memory_space<vmem>>, vector<2x32x256xf32>
    %cst = arith.constant dense<0.000000e+00> : vector<2x32xf32>
    %1 = vector.multi_reduction <add>, %0, %cst [2] : vector<2x32x256xf32> to vector<2x32xf32>
    %cst_2 = arith.constant 3.906250e-03 : f32
    %2 = vector.broadcast %cst_2 : f32 to vector<2x32xf32>
    %3 = arith.mulf %1, %2 : vector<2x32xf32>
    %c0_3 = arith.constant 0 : index
    %c0_4 = arith.constant 0 : index
    %4 = vector.load %arg7[%c0_3, %c0_4] : memref<32x2xf32, #tpu.memory_space<vmem>>, vector<32x2xf32>
    %cst_5 = arith.constant dense<0.000000e+00> : vector<2x2xf32>
    %5 = tpu.matmul %3, %4, %cst_5 {dimension_numbers = #tpu.dot_dimension_numbers<[1], [0], [0], [1], [0, 0, 1, 1], [], []>} : vector<2x32xf32>, vector<32x2xf32>, vector<2x2xf32> -> vector<2x2xf32>
    %c0_6 = arith.constant 0 : index
    %c0_7 = arith.constant 0 : index
    %6 = vector.load %arg8[%c0_6, %c0_7] : memref<1x2xf32, #tpu.memory_space<vmem>>, vector<1x2xf32>
    %7 = vector.broadcast %6 : vector<1x2xf32> to vector<2x2xf32>
    %8 = arith.addf %5, %7 : vector<2x2xf32>
    %cst_8 = arith.constant dense<0xFF800000> : vector<2xf32>
    %9 = vector.multi_reduction <maximumf>, %8, %cst_8 [1] : vector<2x2xf32> to vector<2xf32>
    %cst_9 = arith.constant 0xFF800000 : f32
    %10 = vector.broadcast %cst_9 : f32 to vector<2xf32>
    %11 = arith.maximumf %10, %9 : vector<2xf32>
    %12 = vector.shape_cast %11 : vector<2xf32> to vector<2x1xf32>
    %13 = vector.broadcast %12 : vector<2x1xf32> to vector<2x2xf32>
    %14 = arith.subf %8, %13 : vector<2x2xf32>
    %15 = math.exp %14 : vector<2x2xf32>
    %cst_10 = arith.constant dense<0.000000e+00> : vector<2xf32>
    %16 = vector.multi_reduction <add>, %15, %cst_10 [1] : vector<2x2xf32> to vector<2xf32>
    %17 = vector.shape_cast %16 : vector<2xf32> to vector<2x1xf32>
    %18 = vector.broadcast %17 : vector<2x1xf32> to vector<2x2xf32>
    %19 = arith.divf %15, %18 : vector<2x2xf32>
    %c0_11 = arith.constant 0 : index
    %c0_12 = arith.constant 0 : index
    %20 = vector.load %arg3[%c0_11, %c0_12] : memref<32x16xf32, #tpu.memory_space<vmem>>, vector<32x16xf32>
    %cst_13 = arith.constant dense<0.000000e+00> : vector<2x16xf32>
    %21 = tpu.matmul %3, %20, %cst_13 {dimension_numbers = #tpu.dot_dimension_numbers<[1], [0], [0], [1], [0, 0, 1, 1], [], []>} : vector<2x32xf32>, vector<32x16xf32>, vector<2x16xf32> -> vector<2x16xf32>
    %c0_14 = arith.constant 0 : index
    %c0_15 = arith.constant 0 : index
    %22 = vector.load %arg4[%c0_14, %c0_15] : memref<1x16xf32, #tpu.memory_space<vmem>>, vector<1x16xf32>
    %23 = vector.broadcast %22 : vector<1x16xf32> to vector<2x16xf32>
    %24 = arith.addf %21, %23 : vector<2x16xf32>
    %cst_16 = arith.constant 0.000000e+00 : f32
    %25 = vector.broadcast %cst_16 : f32 to vector<2x16xf32>
    %26 = arith.maximumf %24, %25 : vector<2x16xf32>
    %27 = vector.extract_strided_slice %19 {offsets = [0, 0], sizes = [2, 1], strides = [1, 1]} : vector<2x2xf32> to vector<2x1xf32>
    %28 = vector.shape_cast %27 : vector<2x1xf32> to vector<2x1xf32>
    %29 = vector.broadcast %28 : vector<2x1xf32> to vector<2x8xf32>
    %30 = vector.extract_strided_slice %19 {offsets = [0, 1], sizes = [2, 1], strides = [1, 1]} : vector<2x2xf32> to vector<2x1xf32>
    %31 = vector.shape_cast %30 : vector<2x1xf32> to vector<2x1xf32>
    %32 = vector.broadcast %31 : vector<2x1xf32> to vector<2x8xf32>
    %33 = tpu.concatenate %29, %32 in 1 : vector<2x8xf32>, vector<2x8xf32> -> vector<2x16xf32>
    %34 = arith.mulf %26, %33 : vector<2x16xf32>
    %c0_17 = arith.constant 0 : index
    %c0_18 = arith.constant 0 : index
    %35 = vector.load %arg5[%c0_17, %c0_18] : memref<16x32xf32, #tpu.memory_space<vmem>>, vector<16x32xf32>
    %cst_19 = arith.constant dense<0.000000e+00> : vector<2x32xf32>
    %36 = tpu.matmul %34, %35, %cst_19 {dimension_numbers = #tpu.dot_dimension_numbers<[1], [0], [0], [1], [0, 0, 1, 1], [], []>} : vector<2x16xf32>, vector<16x32xf32>, vector<2x32xf32> -> vector<2x32xf32>
    %c0_20 = arith.constant 0 : index
    %c0_21 = arith.constant 0 : index
    %37 = vector.load %arg6[%c0_20, %c0_21] : memref<2x32xf32, #tpu.memory_space<vmem>>, vector<2x32xf32>
    %cst_22 = arith.constant dense<0.000000e+00> : vector<2x32xf32>
    %38 = tpu.matmul %19, %37, %cst_22 {dimension_numbers = #tpu.dot_dimension_numbers<[1], [0], [0], [1], [0, 0, 1, 1], [], []>} : vector<2x2xf32>, vector<2x32xf32>, vector<2x32xf32> -> vector<2x32xf32>
    %39 = arith.addf %36, %38 : vector<2x32xf32>
    %40 = arith.negf %39 : vector<2x32xf32>
    %41 = math.exp %40 : vector<2x32xf32>
    %cst_23 = arith.constant 1.000000e+00 : f32
    %42 = vector.broadcast %cst_23 : f32 to vector<2x32xf32>
    %43 = arith.addf %42, %41 : vector<2x32xf32>
    %44 = arith.divf %42, %43 : vector<2x32xf32>
    %c0_24 = arith.constant 0 : index
    %c0_25 = arith.constant 0 : index
    %c0_26 = arith.constant 0 : index
    %45 = vector.load %arg2[%c0_24, %c0_25, %c0_26] : memref<2x32x256xf32, #tpu.memory_space<vmem>>, vector<2x32x256xf32>
    %46 = vector.shape_cast %44 : vector<2x32xf32> to vector<2x32x1xf32>
    %47 = vector.broadcast %46 : vector<2x32x1xf32> to vector<2x32x256xf32>
    %48 = arith.mulf %45, %47 : vector<2x32x256xf32>
    %c0_27 = arith.constant 0 : index
    %c0_28 = arith.constant 0 : index
    %c0_29 = arith.constant 0 : index
    %49 = vector.load %arg9[%c0_27, %c0_28, %c0_29] : memref<2x32x256xf32, #tpu.memory_space<vmem>>, vector<2x32x256xf32>
    tpu.vector_store %arg9[%c0_27, %c0_28, %c0_29], %48 {strides = array<i32>} : memref<2x32x256xf32, #tpu.memory_space<vmem>>, vector<2x32x256xf32>,
    return
  }
  func.func @transform_0(%arg0: i32, %arg1: i32) -> (i32, i32, i32) {
    %c0_i32 = arith.constant 0 : i32
    %c0_i32_0 = arith.constant 0 : i32
    return %arg0, %c0_i32, %arg1 : i32, i32, i32
  }
  func.func @transform_1(%arg0: i32, %arg1: i32) -> (i32, i32) {
    %c0_i32 = arith.constant 0 : i32
    %c0_i32_0 = arith.constant 0 : i32
    %c0_i32_1 = arith.constant 0 : i32
    return %c0_i32, %c0_i32_0 : i32, i32
  }
  func.func @transform_2(%arg0: i32, %arg1: i32) -> (i32, i32) {
    %c0_i32 = arith.constant 0 : i32
    %c0_i32_0 = arith.constant 0 : i32
    %c0_i32_1 = arith.constant 0 : i32
    return %c0_i32, %c0_i32_0 : i32, i32
  }
  func.func @transform_3(%arg0: i32, %arg1: i32) -> (i32, i32) {
    %c0_i32 = arith.constant 0 : i32
    %c0_i32_0 = arith.constant 0 : i32
    %c0_i32_1 = arith.constant 0 : i32
    return %c0_i32, %c0_i32_0 : i32, i32
  }
  func.func @transform_4(%arg0: i32, %arg1: i32) -> (i32, i32) {
    %c0_i32 = arith.constant 0 : i32
    %c0_i32_0 = arith.constant 0 : i32
    %c0_i32_1 = arith.constant 0 : i32
    return %c0_i32, %c0_i32_0 : i32, i32
  }
  func.func @transform_5(%arg0: i32, %arg1: i32) -> (i32, i32) {
    %c0_i32 = arith.constant 0 : i32
    %c0_i32_0 = arith.constant 0 : i32
    %c0_i32_1 = arith.constant 0 : i32
    return %c0_i32, %c0_i32_0 : i32, i32
  }
  func.func @transform_6(%arg0: i32, %arg1: i32) -> (i32, i32) {
    %c0_i32 = arith.constant 0 : i32
    %c0_i32_0 = arith.constant 0 : i32
    %c0_i32_1 = arith.constant 0 : i32
    return %c0_i32, %c0_i32_0 : i32, i32
  }
  func.func @transform_7(%arg0: i32, %arg1: i32) -> (i32, i32, i32) {
    %c0_i32 = arith.constant 0 : i32
    %c0_i32_0 = arith.constant 0 : i32
    return %arg0, %c0_i32, %arg1 : i32, i32, i32
  }
}

</mosaic_0001>

<llo_original>
// kernel: domain_attention.1
$region0: #{domain_attention.1}
  #allocation0 [shape = 'u32[]', space=smem, size = 0x4, offset = 0x4, fixed_abs, tag = 'smem constant byte address 0x4 - core index']
  #allocation1 [shape = 'u32[72,128]{1,0:T(1,128)}', space=vmem, size = 0x9000, scoped, tag = 'internal scratch']
  %s0 = inlined_call_operand.vmem [shape: f32[2,32,512], index: 0, kind: input, shape index: {}]
  %s1 = inlined_call_operand.vmem [shape: f32[32,16], index: 1, kind: input, shape index: {}]
  %s2 = inlined_call_operand.vmem [shape: f32[1,16], index: 2, kind: input, shape index: {}]
  %s3 = inlined_call_operand.vmem [shape: f32[16,32], index: 3, kind: input, shape index: {}]
  %s4 = inlined_call_operand.vmem [shape: f32[2,32], index: 4, kind: input, shape index: {}]
  %s5 = inlined_call_operand.vmem [shape: f32[32,2], index: 5, kind: input, shape index: {}]
  %s6 = inlined_call_operand.vmem [shape: f32[1,2], index: 6, kind: input, shape index: {}]
  %s7 = inlined_call_operand.vmem [shape: f32[2,32,512], index: 7, kind: output, shape index: {}]
  %s8 = sld [smem:[#allocation0]]
  $region103: #{domain_attention.1} parent=0
    _
  %s10 = ssub.s32 1, %s8
  %s11 = scalar_select 0, %s10, %s8
  $region1: #{domain_attention.1} parent=0
    #allocation2 [shape = 'u8[131072]{0}', space=vmem, size = 0x20000, scoped, tag = 'input window, operand 0']
    #allocation3 [shape = 'u8[131072]{0}', space=vmem, size = 0x20000, scoped, tag = 'output window, operand 0']
    loop: start=0, step=1, limit=4
    $region2: #{domain_attention.1} parent=1 // loop_pre_header
      _
    $region3: #{domain_attention.1} parent=1 // loop_header
      %s13 = sphi 0, %s17
      %p14 = scmp.ge.s32.totalorder %s13, 4
      %s20 = sphi 0, %s32
      %s21 = sphi 0, %s28
      %s22 = sphi 0, %s20
      %s23 = sphi 0, %s21
      %s24 = sphi 0, %s22
      %s25 = sphi 0, %s23
      %s37 = sphi 0, %s39
      %s40 = sphi 0, %s37
      %s41 = sphi 0, %s40
      %s57 = sphi 0, %s41
      %s61 = sphi 0, %s61
      %s63 = sphi 0, %s61
      %s64 = sphi 0, %s63
      %s78 = sphi 0, %s64
      %s82 = sphi 0, %s82
      %s84 = sphi 0, %s82
      %s85 = sphi 0, %s84
      %s99 = sphi 0, %s85
      %s103 = sphi 0, %s103
      %s105 = sphi 0, %s103
      %s106 = sphi 0, %s105
      %s120 = sphi 0, %s106
      %s124 = sphi 0, %s124
      %s126 = sphi 0, %s124
      %s127 = sphi 0, %s126
      %s141 = sphi 0, %s127
      %s145 = sphi 0, %s145
      %s147 = sphi 0, %s145
      %s148 = sphi 0, %s147
      %s162 = sphi 0, %s148
      %s166 = sphi 0, %s166
      %s168 = sphi 0, %s166
      %s169 = sphi 0, %s168
      %s183 = sphi 0, %s169
      %s191 = sphi 0, %s193
      %s194 = sphi 0, %s191
      %s195 = sphi 0, %s194
      %s211 = sphi 0, %s195
    $region4: #{domain_attention.1} parent=1 // loop_header_branch
      %16 = sbr.rel (%p14) target = $region8
    $region5: #{domain_attention.1} parent=1 // loop_body
      %s18 = ssub.s32 %s13, 1
      %s19 = ssub.s32 %s13, 2
      %s26 = sadd.s32 1, %s21
      %p27 = scmp.ge.s32.totalorder %s26, 2
      %s28 = scalar_select %p27, 0, %s26
      %s29 = sadd.s32 1, %s20
      %s30 = scalar_select %p27, %s29, %s20
      %p31 = scmp.ge.s32.totalorder %s30, 1
      %s32 = scalar_select %p31, 0, %s30
      %s33 = ssub.s32 %s20, %s32
      %s34 = ssub.s32 %s21, %s28
      %s35 = sor.u32 %s33, %s34
      %p36 = scmp.eq.s32.totalorder %s35, 0
      %s38 = sadd.s32 %s37, 1
      %s39 = scalar_select %p36, %s37, %s38
      %p42 = pneg %p36
      %p43 = scmp.eq.s32.totalorder %s13, 1
      %p44 = por %p42, %p43
      %p45 = scmp.ne.s32.totalorder %s37, %s40
      %p46 = scmp.eq.s32.totalorder %s13, 0
      %p47 = por %p45, %p46
      %p48 = scmp.ne.s32.totalorder %s37, %s40
      %p49 = scmp.eq.s32.totalorder %s18, 1
      %p50 = por %p48, %p49
      %p51 = scmp.ne.s32.totalorder %s40, %s41
      %p52 = scmp.eq.s32.totalorder %s18, 0
      %p53 = por %p51, %p52
      %p54 = scmp.ne.s32.totalorder %s40, %s41
      %p55 = scmp.eq.s32.totalorder %s19, 1
      %p56 = por %p54, %p55
      %p58 = scmp.ne.s32.totalorder %s41, %s57
      %p59 = scmp.eq.s32.totalorder %s19, 0
      %p60 = por %p58, %p59
      %s62 = sadd.s32 %s61, 1
      %p65 = scmp.eq.s32.totalorder %s13, 1
      %p66 = scmp.ne.s32.totalorder %s61, %s63
      %p67 = scmp.eq.s32.totalorder %s13, 0
      %p68 = por %p66, %p67
      %p69 = scmp.ne.s32.totalorder %s61, %s63
      %p70 = scmp.eq.s32.totalorder %s18, 1
      %p71 = por %p69, %p70
      %p72 = scmp.ne.s32.totalorder %s63, %s64
      %p73 = scmp.eq.s32.totalorder %s18, 0
      %p74 = por %p72, %p73
      %p75 = scmp.ne.s32.totalorder %s63, %s64
      %p76 = scmp.eq.s32.totalorder %s19, 1
      %p77 = por %p75, %p76
      %p79 = scmp.ne.s32.totalorder %s64, %s78
      %p80 = scmp.eq.s32.totalorder %s19, 0
      %p81 = por %p79, %p80
      %s83 = sadd.s32 %s82, 1
      %p86 = scmp.eq.s32.totalorder %s13, 1
      %p87 = scmp.ne.s32.totalorder %s82, %s84
      %p88 = scmp.eq.s32.totalorder %s13, 0
      %p89 = por %p87, %p88
      %p90 = scmp.ne.s32.totalorder %s82, %s84
      %p91 = scmp.eq.s32.totalorder %s18, 1
      %p92 = por %p90, %p91
      %p93 = scmp.ne.s32.totalorder %s84, %s85
      %p94 = scmp.eq.s32.totalorder %s18, 0
      %p95 = por %p93, %p94
      %p96 = scmp.ne.s32.totalorder %s84, %s85
      %p97 = scmp.eq.s32.totalorder %s19, 1
      %p98 = por %p96, %p97
      %p100 = scmp.ne.s32.totalorder %s85, %s99
      %p101 = scmp.eq.s32.totalorder %s19, 0
      %p102 = por %p100, %p101
      %s104 = sadd.s32 %s103, 1
      %p107 = scmp.eq.s32.totalorder %s13, 1
      %p108 = scmp.ne.s32.totalorder %s103, %s105
      %p109 = scmp.eq.s32.totalorder %s13, 0
      %p110 = por %p108, %p109
      %p111 = scmp.ne.s32.totalorder %s103, %s105
      %p112 = scmp.eq.s32.totalorder %s18, 1
      %p113 = por %p111, %p112
      %p114 = scmp.ne.s32.totalorder %s105, %s106
      %p115 = scmp.eq.s32.totalorder %s18, 0
      %p116 = por %p114, %p115
      %p117 = scmp.ne.s32.totalorder %s105, %s106
      %p118 = scmp.eq.s32.totalorder %s19, 1
      %p119 = por %p117, %p118
      %p121 = scmp.ne.s32.totalorder %s106, %s120
      %p122 = scmp.eq.s32.totalorder %s19, 0
      %p123 = por %p121, %p122
      %s125 = sadd.s32 %s124, 1
      %p128 = scmp.eq.s32.totalorder %s13, 1
      %p129 = scmp.ne.s32.totalorder %s124, %s126
      %p130 = scmp.eq.s32.totalorder %s13, 0
      %p131 = por %p129, %p130
      %p132 = scmp.ne.s32.totalorder %s124, %s126
      %p133 = scmp.eq.s32.totalorder %s18, 1
      %p134 = por %p132, %p133
      %p135 = scmp.ne.s32.totalorder %s126, %s127
      %p136 = scmp.eq.s32.totalorder %s18, 0
      %p137 = por %p135, %p136
      %p138 = scmp.ne.s32.totalorder %s126, %s127
      %p139 = scmp.eq.s32.totalorder %s19, 1
      %p140 = por %p138, %p139
      %p142 = scmp.ne.s32.totalorder %s127, %s141
      %p143 = scmp.eq.s32.totalorder %s19, 0
      %p144 = por %p142, %p143
      %s146 = sadd.s32 %s145, 1
      %p149 = scmp.eq.s32.totalorder %s13, 1
      %p150 = scmp.ne.s32.totalorder %s145, %s147
      %p151 = scmp.eq.s32.totalorder %s13, 0
      %p152 = por %p150, %p151
      %p153 = scmp.ne.s32.totalorder %s145, %s147
      %p154 = scmp.eq.s32.totalorder %s18, 1
      %p155 = por %p153, %p154
      %p156 = scmp.ne.s32.totalorder %s147, %s148
      %p157 = scmp.eq.s32.totalorder %s18, 0
      %p158 = por %p156, %p157
      %p159 = scmp.ne.s32.totalorder %s147, %s148
      %p160 = scmp.eq.s32.totalorder %s19, 1
      %p161 = por %p159, %p160
      %p163 = scmp.ne.s32.totalorder %s148, %s162
      %p164 = scmp.eq.s32.totalorder %s19, 0
      %p165 = por %p163, %p164
      %s167 = sadd.s32 %s166, 1
      %p170 = scmp.eq.s32.totalorder %s13, 1
      %p171 = scmp.ne.s32.totalorder %s166, %s168
      %p172 = scmp.eq.s32.totalorder %s13, 0
      %p173 = por %p171, %p172
      %p174 = scmp.ne.s32.totalorder %s166, %s168
      %p175 = scmp.eq.s32.totalorder %s18, 1
      %p176 = por %p174, %p175
      %p177 = scmp.ne.s32.totalorder %s168, %s169
      %p178 = scmp.eq.s32.totalorder %s18, 0
      %p179 = por %p177, %p178
      %p180 = scmp.ne.s32.totalorder %s168, %s169
      %p181 = scmp.eq.s32.totalorder %s19, 1
      %p182 = por %p180, %p181
      %p184 = scmp.ne.s32.totalorder %s169, %s183
      %p185 = scmp.eq.s32.totalorder %s19, 0
      %p186 = por %p184, %p185
      %s187 = ssub.s32 %s20, %s32
      %s188 = ssub.s32 %s21, %s28
      %s189 = sor.u32 %s187, %s188
      %p190 = scmp.eq.s32.totalorder %s189, 0
      %s192 = sadd.s32 %s191, 1
      %s193 = scalar_select %p190, %s191, %s192
      %p196 = pneg %p190
      %p197 = scmp.eq.s32.totalorder %s13, 1
      %p198 = por %p196, %p197
      %p199 = scmp.ne.s32.totalorder %s191, %s194
      %p200 = scmp.eq.s32.totalorder %s13, 0
      %p201 = por %p199, %p200
      %p202 = scmp.ne.s32.totalorder %s191, %s194
      %p203 = scmp.eq.s32.totalorder %s18, 1
      %p204 = por %p202, %p203
      %p205 = scmp.ne.s32.totalorder %s194, %s195
      %p206 = scmp.eq.s32.totalorder %s18, 0
      %p207 = por %p205, %p206
      %p208 = scmp.ne.s32.totalorder %s194, %s195
      %p209 = scmp.eq.s32.totalorder %s19, 1
      %p210 = por %p208, %p209
      %p212 = scmp.ne.s32.totalorder %s195, %s211
      %p213 = scmp.eq.s32.totalorder %s19, 0
      %p214 = por %p212, %p213
      %p215 = scmp.le.s32.totalorder 1, %s13
      %p216 = scmp.lt.s32.totalorder %s13, 3
      %p217 = pnand %p215, %p216
      %p218 = pneg %p217
      // Predicated region
      $region9: #{domain_attention.1} parent=5 // pred_check
        _
      $region10: #{domain_attention.1} parent=5 // pred_check_branch
        %220 = sbr.rel (%p217) target = $region12
      $region11: #{domain_attention.1} parent=5 // pred_region
        %s221 = ssub.s32 %s13, 1
        // Predicated region
        $region13: #{domain_attention.1} parent=11 // pred_check
          %p222 = pneg %p74
        $region14: #{domain_attention.1} parent=11 // pred_check_branch
          %224 = sbr.rel (%p222) target = $region16
        $region15: #{domain_attention.1} parent=11 // pred_region
          _
        $region16: #{domain_attention.1} parent=11 // pred_fallthru
          _
        // Predicated region
        $region17: #{domain_attention.1} parent=11 // pred_check
          %p225 = pneg %p95
        $region18: #{domain_attention.1} parent=11 // pred_check_branch
          %227 = sbr.rel (%p225) target = $region20
        $region19: #{domain_attention.1} parent=11 // pred_region
          _
        $region20: #{domain_attention.1} parent=11 // pred_fallthru
          _
        // Predicated region
        $region21: #{domain_attention.1} parent=11 // pred_check
          %p228 = pneg %p116
        $region22: #{domain_attention.1} parent=11 // pred_check_branch
          %230 = sbr.rel (%p228) target = $region24
        $region23: #{domain_attention.1} parent=11 // pred_region
          _
        $region24: #{domain_attention.1} parent=11 // pred_fallthru
          _
        // Predicated region
        $region25: #{domain_attention.1} parent=11 // pred_check
          %p231 = pneg %p137
        $region26: #{domain_attention.1} parent=11 // pred_check_branch
          %233 = sbr.rel (%p231) target = $region28
        $region27: #{domain_attention.1} parent=11 // pred_region
          _
        $region28: #{domain_attention.1} parent=11 // pred_fallthru
          _
        // Predicated region
        $region29: #{domain_attention.1} parent=11 // pred_check
          %p234 = pneg %p158
        $region30: #{domain_attention.1} parent=11 // pred_check_branch
          %236 = sbr.rel (%p234) target = $region32
        $region31: #{domain_attention.1} parent=11 // pred_region
          _
        $region32: #{domain_attention.1} parent=11 // pred_fallthru
          _
        // Predicated region
        $region33: #{domain_attention.1} parent=11 // pred_check
          %p237 = pneg %p179
        $region34: #{domain_attention.1} parent=11 // pred_check_branch
          %239 = sbr.rel (%p237) target = $region36
        $region35: #{domain_attention.1} parent=11 // pred_region
          _
        $region36: #{domain_attention.1} parent=11 // pred_fallthru
          _
      $region12: #{domain_attention.1} parent=5 // pred_fallthru
        _
      %p240 = scmp.lt.s32.totalorder %s13, 2
      // Predicated region
      $region37: #{domain_attention.1} parent=5 // pred_check
        %p241 = pneg %p240
      $region38: #{domain_attention.1} parent=5 // pred_check_branch
        %243 = sbr.rel (%p241) target = $region40
      $region39: #{domain_attention.1} parent=5 // pred_region
        // Predicated region
        $region41: #{domain_attention.1} parent=39 // pred_check
          %p244 = pneg %p47
        $region42: #{domain_attention.1} parent=39 // pred_check_branch
          %246 = sbr.rel (%p244) target = $region44
        $region43: #{domain_attention.1} parent=39 // pred_region
          %s247 = sand.u32 %s37, 1
          %s248 = sand.u32 %s37, 1
          %s249 = smul.addr %s248, 128
          %s250 = scalar_lea.vmem [#allocation2], %s249
          %s251 = smul.u32 2, %s20
          %s252 = smul.u32 2, %s21
          %s253 = smul.addr %s251, 16
          %s254 = sadd.s32 %s252, %s253
          %s255 = smul.addr %s254, 8
          %s256 = scalar_lea.vmem %s0, %s255
          // Predicated region
          $region45: #{domain_attention.1} parent=43 // pred_check
            _
          $region46: #{domain_attention.1} parent=43 // pred_check_branch
            %258 = sbr.rel (0) target = $region48
          $region47: #{domain_attention.1} parent=43 // pred_region
            // Predicated region
            $region49: #{domain_attention.1} parent=47 // pred_check
              _
            $region50: #{domain_attention.1} parent=47 // pred_check_branch
              %260 = sbr.rel (0) target = $region52
            $region51: #{domain_attention.1} parent=47 // pred_region
              loop: start=0, step=1, limit=1
              $region53: #{domain_attention.1} parent=51 // loop_pre_header
                _
              $region54: #{domain_attention.1} parent=51 // loop_header
                %s262 = sphi 0, %s266
                %p263 = scmp.ge.s32.totalorder %s262, 1
                %s267 = sphi %s256, %s256
                %s268 = sphi %s250, %s250
              $region55: #{domain_attention.1} parent=51 // loop_header_branch
                %265 = sbr.rel (%p263) target = $region59
              $region56: #{domain_attention.1} parent=51 // loop_body
                %v269 = vld [vmem:[%s267] sm:$0xff]
                %270 = vst [vmem:[%s268] sm:$0xff] %v269
                %v271 = vld [vmem:[%s267 + $0x8] sm:$0xff]
                %272 = vst [vmem:[%s268 + $0x8] sm:$0xff] %v271
                %v273 = vld [vmem:[%s267 + $0x20] sm:$0xff]
                %274 = vst [vmem:[%s268 + $0x10] sm:$0xff] %v273
                %v275 = vld [vmem:[%s267 + $0x28] sm:$0xff]
                %276 = vst [vmem:[%s268 + $0x18] sm:$0xff] %v275
                %v277 = vld [vmem:[%s267 + $0x40] sm:$0xff]
                %278 = vst [vmem:[%s268 + $0x20] sm:$0xff] %v277
                %v279 = vld [vmem:[%s267 + $0x48] sm:$0xff]
                %280 = vst [vmem:[%s268 + $0x28] sm:$0xff] %v279
                %v281 = vld [vmem:[%s267 + $0x60] sm:$0xff]
                %282 = vst [vmem:[%s268 + $0x30] sm:$0xff] %v281
                %v283 = vld [vmem:[%s267 + $0x68] sm:$0xff]
                %284 = vst [vmem:[%s268 + $0x38] sm:$0xff] %v283
                %v285 = vld [vmem:[%s267 + $0x80] sm:$0xff]
                %286 = vst [vmem:[%s268 + $0x40] sm:$0xff] %v285
                %v287 = vld [vmem:[%s267 + $0x88] sm:$0xff]
                %288 = vst [vmem:[%s268 + $0x48] sm:$0xff] %v287
                %v289 = vld [vmem:[%s267 + $0xa0] sm:$0xff]
                %290 = vst [vmem:[%s268 + $0x50] sm:$0xff] %v289
                %v291 = vld [vmem:[%s267 + $0xa8] sm:$0xff]
                %292 = vst [vmem:[%s268 + $0x58] sm:$0xff] %v291
                %v293 = vld [vmem:[%s267 + $0xc0] sm:$0xff]
                %294 = vst [vmem:[%s268 + $0x60] sm:$0xff] %v293
                %v295 = vld [vmem:[%s267 + $0xc8] sm:$0xff]
                %296 = vst [vmem:[%s268 + $0x68] sm:$0xff] %v295
                %v297 = vld [vmem:[%s267 + $0xe0] sm:$0xff]
                %298 = vst [vmem:[%s268 + $0x70] sm:$0xff] %v297
                %v299 = vld [vmem:[%s267 + $0xe8] sm:$0xff]
                %300 = vst [vmem:[%s268 + $0x78] sm:$0xff] %v299
              $region57: #{domain_attention.1} parent=51 // loop_footer
                %s266 = sadd.s32 1, %s262
              $region58: #{domain_attention.1} parent=51 // loop_footer_branch
                %261 = sbr.rel target = $region54
              $region59: #{domain_attention.1} parent=51 // loop_exit
                _
            $region52: #{domain_attention.1} parent=47 // pred_fallthru
              _
            // Predicated region
            $region60: #{domain_attention.1} parent=47 // pred_check
              _
            $region61: #{domain_attention.1} parent=47 // pred_check_branch
              %302 = sbr.rel target = $region63
            $region62: #{domain_attention.1} parent=47 // pred_region
              _
            $region63: #{domain_attention.1} parent=47 // pred_fallthru
              _
          $region48: #{domain_attention.1} parent=43 // pred_fallthru
            _
          %303 = vnop
        $region44: #{domain_attention.1} parent=39 // pred_fallthru
          _
      $region40: #{domain_attention.1} parent=5 // pred_fallthru
        _
      %p304 = scmp.le.s32.totalorder 1, %s13
      %p305 = scmp.lt.s32.totalorder %s13, 3
      %p306 = pnand %p304, %p305
      %p307 = pneg %p306
      // Predicated region
      $region64: #{domain_attention.1} parent=5 // pred_check
        _
      $region65: #{domain_attention.1} parent=5 // pred_check_branch
        %309 = sbr.rel (%p306) target = $region67
      $region66: #{domain_attention.1} parent=5 // pred_region
        %s310 = ssub.s32 %s13, 1
        %s311 = sand.u32 %s40, 1
        %s312 = sand.u32 %s40, 1
        %s313 = smul.addr %s312, 128
        %s314 = scalar_lea.vmem [#allocation2], %s313
        // Predicated region
        $region68: #{domain_attention.1} parent=66 // pred_check
          %p315 = pneg %p53
        $region69: #{domain_attention.1} parent=66 // pred_check_branch
          %317 = sbr.rel (%p315) target = $region71
        $region70: #{domain_attention.1} parent=66 // pred_region
          _
        $region71: #{domain_attention.1} parent=66 // pred_fallthru
          _
        %s318 = sand.u32 %s40, 1
        %s319 = sand.u32 %s40, 1
        %s320 = smul.addr %s319, 128
        %s321 = scalar_lea.vmem [#allocation2], %s320
        %p322 = pneg %p53
        %p323 = pneg %p50
        %p324 = pneg %p74
        %p325 = pneg %p71
        %p326 = pneg %p95
        %p327 = pneg %p92
        %p328 = pneg %p116
        %p329 = pneg %p113
        %p330 = pneg %p137
        %p331 = pneg %p134
        %p332 = pneg %p158
        %p333 = pneg %p155
        %p334 = pneg %p179
        %p335 = pneg %p176
        %p336 = pneg %p207
        %p337 = pneg %p204
        %s338 = sand.u32 %s194, 1
        %s339 = sand.u32 %s194, 1
        %s340 = smul.addr %s339, 128
        %s341 = scalar_lea.vmem [#allocation3], %s340
        %s342 = smul.u32 2, %s22
        %s343 = smul.u32 2, %s23
        %s344 = smul.u32 2, %s22
        %s345 = smul.u32 2, %s23
        %v346 = vld [vmem:[%s314] sm:$0xff]
        %v347 = vld [vmem:[%s314 + $0x8] sm:$0xff]
        %v348 = vld [vmem:[%s314 + $0x10] sm:$0xff]
        %v349 = vld [vmem:[%s314 + $0x18] sm:$0xff]
        %v350 = vld [vmem:[%s314 + $0x20] sm:$0xff]
        %v351 = vld [vmem:[%s314 + $0x28] sm:$0xff]
        %v352 = vld [vmem:[%s314 + $0x30] sm:$0xff]
        %v353 = vld [vmem:[%s314 + $0x38] sm:$0xff]
        %v354 = vld [vmem:[%s314 + $0x40] sm:$0xff]
        %v355 = vld [vmem:[%s314 + $0x48] sm:$0xff]
        %v356 = vld [vmem:[%s314 + $0x50] sm:$0xff]
        %v357 = vld [vmem:[%s314 + $0x58] sm:$0xff]
        %v358 = vld [vmem:[%s314 + $0x60] sm:$0xff]
        %v359 = vld [vmem:[%s314 + $0x68] sm:$0xff]
        %v360 = vld [vmem:[%s314 + $0x70] sm:$0xff]
        %v361 = vld [vmem:[%s314 + $0x78] sm:$0xff]
        %v362 = vadd.f32 %v346, %v347
        %363 = vadd.xlane.f32.xlu0 %v362
        %v364 = vpop.xlane.xlu0 %363
        %v365 = vadd.f32 %v348, %v349
        %366 = vadd.xlane.f32.xlu0 %v365
        %v367 = vpop.xlane.xlu0 %366
        %v368 = vadd.f32 %v350, %v351
        %369 = vadd.xlane.f32.xlu0 %v368
        %v370 = vpop.xlane.xlu0 %369
        %v371 = vadd.f32 %v352, %v353
        %372 = vadd.xlane.f32.xlu0 %v371
        %v373 = vpop.xlane.xlu0 %372
        %v374 = vadd.f32 %v354, %v355
        %375 = vadd.xlane.f32.xlu0 %v374
        %v376 = vpop.xlane.xlu0 %375
        %v377 = vadd.f32 %v356, %v357
        %378 = vadd.xlane.f32.xlu0 %v377
        %v379 = vpop.xlane.xlu0 %378
        %v380 = vadd.f32 %v358, %v359
        %381 = vadd.xlane.f32.xlu0 %v380
        %v382 = vpop.xlane.xlu0 %381
        %v383 = vadd.f32 %v360, %v361
        %384 = vadd.xlane.f32.xlu0 %v383
        %v385 = vpop.xlane.xlu0 %384
        %v386 = vmul.f32 %v364, 0.00390625
        %v387 = vmul.f32 %v367, 0.00390625
        %v388 = vmul.f32 %v370, 0.00390625
        %v389 = vmul.f32 %v373, 0.00390625
        %v390 = vmul.f32 %v376, 0.00390625
        %v391 = vmul.f32 %v379, 0.00390625
        %v392 = vmul.f32 %v382, 0.00390625
        %v393 = vmul.f32 %v385, 0.00390625
        %v394 = vld [vmem:[%s5] sm:$0xff]
        %v395 = vld [vmem:[%s5 + $0x8] sm:$0xff]
        %v396 = vld [vmem:[%s5 + $0x10] sm:$0xff]
        %v397 = vld [vmem:[%s5 + $0x18] sm:$0xff]
        %v398 = vld [vmem:[%s6] sm:$0x1]
        %v400 = vperm.slane %v398, 0
        %v410 = vlaneseq
        %v411 = vand.u32 %v410, 127
        %v412 = vperm.slane %v386, %v411
        %v413 = vadd.s32 %v411, 4294967288
        %v414 = vperm.slane %v387, %v413
        %vm415 = vcmask 130112
        %v416 = vsel %vm415, %v414, %v412
        %v417 = vadd.s32 %v411, 4294967280
        %v418 = vperm.slane %v388, %v417
        %vm419 = vcmask 195712
        %v420 = vsel %vm419, %v418, %v416
        %v421 = vadd.s32 %v411, 4294967272
        %v422 = vperm.slane %v389, %v421
        %vm423 = vcmask 261312
        %v424 = vsel %vm423, %v422, %v420
        %v425 = vperm.slane %v390, %v411
        %v426 = vperm.slane %v391, %v413
        %v427 = vsel %vm415, %v426, %v425
        %v428 = vperm.slane %v392, %v417
        %v429 = vsel %vm419, %v428, %v427
        %v430 = vperm.slane %v393, %v421
        %v431 = vsel %vm423, %v430, %v429
        %vm432 = vcmask 1041409
        %v433 = vsel %vm432, %v431, %v424
        %vm434 = vcmask 261120
        %v435 = vsel %vm434, %v433, 0
        %437 = vmatpush.msra.mxu0 0.0
        %438 = vmatpush.msra.mxu0 0.0
        %439 = vmatpush.msra.mxu0 0.0
        %440 = vmatpush.msra.mxu0 0.0
        %441 = vmatpush.msra.mxu0 0.0
        %442 = vmatpush.msra.mxu0 0.0
        %443 = vmatpush.msra.mxu0 0.0
        %444 = vmatpush.msra.mxu0 0.0
        %445 = vmatpush.msra.mxu0 0.0
        %446 = vmatpush.msra.mxu0 0.0
        %447 = vmatpush.msra.mxu0 0.0
        %448 = vmatpush.msra.mxu0 0.0
        %449 = vmatpush.msra.mxu0 %v397
        %450 = vmatpush.msra.mxu0 %v396
        %451 = vmatpush.msra.mxu0 %v395
        %452 = vmatpush.msra.mxu0 %v394
        %453 = vmatmul.f32.gmra.mxu0 %v435
        %v454 = vpop.f32.mrf.mxu0
        %v455 = vadd.f32 %v400, %v454
        %456 = vdwg.mxu0
        %vm457 = vcmask 9216
        %v458 = vsel %vm457, %v455, -inf
        %459 = vmax.xlane.f32.xlu0 %v458
        %v460 = vpop.xlane.xlu0 %459
        %v461 = vsub.f32 %v455, %v460
        %v462 = vmul.f32 %v461, 1.442695
        %v463 = vpow.pop %v462
        %v464 = vsel %vm457, %v463, 0.0
        %465 = vadd.xlane.f32.xlu0 %v464
        %v466 = vpop.xlane.xlu0 %465
        %v467 = vrcp.pop %v466
        %v468 = vmul.f32 %v466, %v467
        %v469 = vsub.f32 1.0, %v468
        %v470 = vmul.f32 %v467, %v469
        %v471 = vadd.f32 %v467, %v470
        %vm472 = vweird.f32 %v466
        %vm473 = vweird.f32 %v467
        %vm474 = vmor %vm472, %vm473
        %v475 = vsel %vm474, %v467, %v471
        %v476 = vand.u32 2147483647, %v466
        %vm477 = vcmp.eq.f32.partialorder %v476, 8.507059e+37
        %v478 = vand.u32 %v466, 2147483648
        %v479 = vor.u32 1.1754944e-38, %v478
        %v480 = vsel %vm477, %v479, %v475
        %v481 = vmul.f32 %v463, %v480
        %v482 = vld [vmem:[%s1] sm:$0xff]
        %v483 = vld [vmem:[%s1 + $0x8] sm:$0xff]
        %v484 = vld [vmem:[%s1 + $0x10] sm:$0xff]
        %v485 = vld [vmem:[%s1 + $0x18] sm:$0xff]
        %v486 = vld [vmem:[%s2] sm:$0x1]
        %v488 = vperm.slane %v486, 0
        %490 = vmatpush.msra.mxu0 0.0
        %491 = vmatpush.msra.mxu0 0.0
        %492 = vmatpush.msra.mxu0 0.0
        %493 = vmatpush.msra.mxu0 0.0
        %494 = vmatpush.msra.mxu0 0.0
        %495 = vmatpush.msra.mxu0 0.0
        %496 = vmatpush.msra.mxu0 0.0
        %497 = vmatpush.msra.mxu0 0.0
        %498 = vmatpush.msra.mxu0 0.0
        %499 = vmatpush.msra.mxu0 0.0
        %500 = vmatpush.msra.mxu0 0.0
        %501 = vmatpush.msra.mxu0 0.0
        %502 = vmatpush.msra.mxu0 %v485
        %503 = vmatpush.msra.mxu0 %v484
        %504 = vmatpush.msra.mxu0 %v483
        %505 = vmatpush.msra.mxu0 %v482
        %506 = vmatmul.f32.gmra.mxu0 %v435
        %v507 = vpop.f32.mrf.mxu0
        %v508 = vadd.f32 %v488, %v507
        %509 = vdwg.mxu0
        %v510 = vmax.f32 %v508, 0.0
        %512 = vset.pattern.permute.xlu0 0
        %513 = vperm.xlu0 %512, %v481
        %v514 = vpop.permute.xlu0 %513
        %516 = vset.pattern.permute.xlu0 1
        %517 = vperm.xlu0 %516, %v481
        %v518 = vpop.permute.xlu0 %517
        %vm520 = vcmask 64512
        %v521 = vsel %vm520, %v514, %v518
        %v522 = vmul.f32 %v510, %v521
        %v523 = vld [vmem:[%s3] sm:$0xff]
        %v524 = vld [vmem:[%s3 + $0x8] sm:$0xff]
        %v525 = vld [vmem:[%s4] sm:$0x3]
        %vm526 = vcmask 15360
        %v527 = vsel %vm526, %v481, 0
        %vm529 = vcmask 1041408
        %v531 = vsel %vm529, %v525, 0
        %533 = vmatpush.msra.mxu0 0.0
        %534 = vmatpush.msra.mxu0 0.0
        %535 = vmatpush.msra.mxu0 0.0
        %536 = vmatpush.msra.mxu0 0.0
        %537 = vmatpush.msra.mxu0 0.0
        %538 = vmatpush.msra.mxu0 0.0
        %539 = vmatpush.msra.mxu0 0.0
        %540 = vmatpush.msra.mxu0 0.0
        %541 = vmatpush.msra.mxu0 0.0
        %542 = vmatpush.msra.mxu0 0.0
        %543 = vmatpush.msra.mxu0 0.0
        %544 = vmatpush.msra.mxu0 0.0
        %545 = vmatpush.msra.mxu0 0.0
        %546 = vmatpush.msra.mxu0 0.0
        %547 = vmatpush.msra.mxu0 0.0
        %548 = vmatpush.msra.mxu0 %v531
        %549 = vmatmul.f32.gmra.mxu0 %v527
        %v550 = vpop.f32.mrf.mxu0
        %v551 = vadd.f32 0.0, %v550
        %552 = vdwg.mxu0
        %vm553 = vcmask 130048
        %v555 = vsel %vm553, %v522, 0
        %557 = vmatpush.msra.mxu0 0.0
        %558 = vmatpush.msra.mxu0 0.0
        %559 = vmatpush.msra.mxu0 0.0
        %560 = vmatpush.msra.mxu0 0.0
        %561 = vmatpush.msra.mxu0 0.0
        %562 = vmatpush.msra.mxu0 0.0
        %563 = vmatpush.msra.mxu0 0.0
        %564 = vmatpush.msra.mxu0 0.0
        %565 = vmatpush.msra.mxu0 0.0
        %566 = vmatpush.msra.mxu0 0.0
        %567 = vmatpush.msra.mxu0 0.0
        %568 = vmatpush.msra.mxu0 0.0
        %569 = vmatpush.msra.mxu0 0.0
        %570 = vmatpush.msra.mxu0 0.0
        %571 = vmatpush.msra.mxu0 %v524
        %572 = vmatpush.msra.mxu0 %v523
        %573 = vmatmul.f32.gmra.mxu0 %v555
        %v574 = vpop.f32.mrf.mxu0
        %v575 = vadd.f32 %v551, %v574
        %576 = vdwg.mxu0
        %v577 = vxor.u32 %v575, 2147483648
        %v578 = vmul.f32 %v577, 1.442695
        %v579 = vpow.pop %v578
        %v580 = vadd.f32 %v579, 1.0
        %v581 = vrcp.pop %v580
        %v582 = vmul.f32 %v580, %v581
        %v583 = vsub.f32 1.0, %v582
        %v584 = vmul.f32 %v581, %v583
        %v585 = vadd.f32 %v581, %v584
        %vm586 = vweird.f32 %v580
        %vm587 = vweird.f32 %v581
        %vm588 = vmor %vm586, %vm587
        %v589 = vsel %vm588, %v581, %v585
        %v590 = vand.u32 2147483647, %v580
        %vm591 = vcmp.eq.f32.partialorder %v590, 8.507059e+37
        %v592 = vand.u32 %v580, 2147483648
        %v593 = vor.u32 1.1754944e-38, %v592
        %v594 = vsel %vm591, %v593, %v589
        %v595 = vmul.f32 1.0, %v594
        %v596 = vperm.slane %v595, 0
        %v597 = vlaneseq
        %v598 = vshrl.u32 %v597, 7
        %600 = vset.pattern.permute.xlu0 %v598
        %601 = vperm.xlu0 %600, %v596
        %v602 = vpop.permute.xlu0 %601
        %v603 = vlaneseq
        %v604 = vshrl.u32 %v603, 7
        %v605 = vadd.s32 %v604, 8
        %606 = vset.pattern.permute.xlu0 %v605
        %607 = vperm.xlu0 %606, %v596
        %v608 = vpop.permute.xlu0 %607
        %v609 = vlaneseq
        %v610 = vshrl.u32 %v609, 7
        %v611 = vadd.s32 %v610, 16
        %612 = vset.pattern.permute.xlu0 %v611
        %613 = vperm.xlu0 %612, %v596
        %v614 = vpop.permute.xlu0 %613
        %v615 = vlaneseq
        %v616 = vshrl.u32 %v615, 7
        %v617 = vadd.s32 %v616, 24
        %618 = vset.pattern.permute.xlu0 %v617
        %619 = vperm.xlu0 %618, %v596
        %v620 = vpop.permute.xlu0 %619
        %v621 = vperm.slane %v595, 1
        %v622 = vlaneseq
        %v623 = vshrl.u32 %v622, 7
        %625 = vset.pattern.permute.xlu0 %v623
        %626 = vperm.xlu0 %625, %v621
        %v627 = vpop.permute.xlu0 %626
        %v628 = vlaneseq
        %v629 = vshrl.u32 %v628, 7
        %v630 = vadd.s32 %v629, 8
        %631 = vset.pattern.permute.xlu0 %v630
        %632 = vperm.xlu0 %631, %v621
        %v633 = vpop.permute.xlu0 %632
        %v634 = vlaneseq
        %v635 = vshrl.u32 %v634, 7
        %v636 = vadd.s32 %v635, 16
        %637 = vset.pattern.permute.xlu0 %v636
        %638 = vperm.xlu0 %637, %v621
        %v639 = vpop.permute.xlu0 %638
        %v640 = vlaneseq
        %v641 = vshrl.u32 %v640, 7
        %v642 = vadd.s32 %v641, 24
        %643 = vset.pattern.permute.xlu0 %v642
        %644 = vperm.xlu0 %643, %v621
        %v645 = vpop.permute.xlu0 %644
        %v646 = vmul.f32 %v346, %v602
        %v647 = vmul.f32 %v347, %v602
        %v648 = vmul.f32 %v348, %v608
        %v649 = vmul.f32 %v349, %v608
        %v650 = vmul.f32 %v350, %v614
        %v651 = vmul.f32 %v351, %v614
        %v652 = vmul.f32 %v352, %v620
        %v653 = vmul.f32 %v353, %v620
        %v654 = vmul.f32 %v354, %v627
        %v655 = vmul.f32 %v355, %v627
        %v656 = vmul.f32 %v356, %v633
        %v657 = vmul.f32 %v357, %v633
        %v658 = vmul.f32 %v358, %v639
        %v659 = vmul.f32 %v359, %v639
        %v660 = vmul.f32 %v360, %v645
        %v661 = vmul.f32 %v361, %v645
        %662 = vst [vmem:[%s341] sm:$0xff] %v646
        %663 = vst [vmem:[%s341 + $0x8] sm:$0xff] %v647
        %664 = vst [vmem:[%s341 + $0x10] sm:$0xff] %v648
        %665 = vst [vmem:[%s341 + $0x18] sm:$0xff] %v649
        %666 = vst [vmem:[%s341 + $0x20] sm:$0xff] %v650
        %667 = vst [vmem:[%s341 + $0x28] sm:$0xff] %v651
        %668 = vst [vmem:[%s341 + $0x30] sm:$0xff] %v652
        %669 = vst [vmem:[%s341 + $0x38] sm:$0xff] %v653
        %670 = vst [vmem:[%s341 + $0x40] sm:$0xff] %v654
        %671 = vst [vmem:[%s341 + $0x48] sm:$0xff] %v655
        %672 = vst [vmem:[%s341 + $0x50] sm:$0xff] %v656
        %673 = vst [vmem:[%s341 + $0x58] sm:$0xff] %v657
        %674 = vst [vmem:[%s341 + $0x60] sm:$0xff] %v658
        %675 = vst [vmem:[%s341 + $0x68] sm:$0xff] %v659
        %676 = vst [vmem:[%s341 + $0x70] sm:$0xff] %v660
        %677 = vst [vmem:[%s341 + $0x78] sm:$0xff] %v661
        %s678 = sand.u32 %s194, 1
        %s679 = sand.u32 %s194, 1
        %s680 = smul.addr %s679, 128
        %s681 = scalar_lea.vmem [#allocation3], %s680
        // Predicated region
        $region72: #{domain_attention.1} parent=66 // pred_check
          %p682 = pneg %p204
        $region73: #{domain_attention.1} parent=66 // pred_check_branch
          %684 = sbr.rel (%p682) target = $region75
        $region74: #{domain_attention.1} parent=66 // pred_region
          %s685 = smul.u32 2, %s22
          %s686 = smul.u32 2, %s23
          %s687 = smul.addr %s685, 16
          %s688 = sadd.s32 %s686, %s687
          %s689 = smul.addr %s688, 8
          %s690 = scalar_lea.vmem %s7, %s689
          // Predicated region
          $region76: #{domain_attention.1} parent=74 // pred_check
            _
          $region77: #{domain_attention.1} parent=74 // pred_check_branch
            %692 = sbr.rel (0) target = $region79
          $region78: #{domain_attention.1} parent=74 // pred_region
            // Predicated region
            $region80: #{domain_attention.1} parent=78 // pred_check
              _
            $region81: #{domain_attention.1} parent=78 // pred_check_branch
              %694 = sbr.rel (0) target = $region83
            $region82: #{domain_attention.1} parent=78 // pred_region
              loop: start=0, step=1, limit=1
              $region84: #{domain_attention.1} parent=82 // loop_pre_header
                _
              $region85: #{domain_attention.1} parent=82 // loop_header
                %s696 = sphi 0, %s700
                %p697 = scmp.ge.s32.totalorder %s696, 1
                %s701 = sphi %s681, %s681
                %s702 = sphi %s690, %s690
              $region86: #{domain_attention.1} parent=82 // loop_header_branch
                %699 = sbr.rel (%p697) target = $region90
              $region87: #{domain_attention.1} parent=82 // loop_body
                %v703 = vld [vmem:[%s701] sm:$0xff]
                %704 = vst [vmem:[%s702] sm:$0xff] %v703
                %v705 = vld [vmem:[%s701 + $0x8] sm:$0xff]
                %706 = vst [vmem:[%s702 + $0x8] sm:$0xff] %v705
                %v707 = vld [vmem:[%s701 + $0x10] sm:$0xff]
                %708 = vst [vmem:[%s702 + $0x20] sm:$0xff] %v707
                %v709 = vld [vmem:[%s701 + $0x18] sm:$0xff]
                %710 = vst [vmem:[%s702 + $0x28] sm:$0xff] %v709
                %v711 = vld [vmem:[%s701 + $0x20] sm:$0xff]
                %712 = vst [vmem:[%s702 + $0x40] sm:$0xff] %v711
                %v713 = vld [vmem:[%s701 + $0x28] sm:$0xff]
                %714 = vst [vmem:[%s702 + $0x48] sm:$0xff] %v713
                %v715 = vld [vmem:[%s701 + $0x30] sm:$0xff]
                %716 = vst [vmem:[%s702 + $0x60] sm:$0xff] %v715
                %v717 = vld [vmem:[%s701 + $0x38] sm:$0xff]
                %718 = vst [vmem:[%s702 + $0x68] sm:$0xff] %v717
                %v719 = vld [vmem:[%s701 + $0x40] sm:$0xff]
                %720 = vst [vmem:[%s702 + $0x80] sm:$0xff] %v719
                %v721 = vld [vmem:[%s701 + $0x48] sm:$0xff]
                %722 = vst [vmem:[%s702 + $0x88] sm:$0xff] %v721
                %v723 = vld [vmem:[%s701 + $0x50] sm:$0xff]
                %724 = vst [vmem:[%s702 + $0xa0] sm:$0xff] %v723
                %v725 = vld [vmem:[%s701 + $0x58] sm:$0xff]
                %726 = vst [vmem:[%s702 + $0xa8] sm:$0xff] %v725
                %v727 = vld [vmem:[%s701 + $0x60] sm:$0xff]
                %728 = vst [vmem:[%s702 + $0xc0] sm:$0xff] %v727
                %v729 = vld [vmem:[%s701 + $0x68] sm:$0xff]
                %730 = vst [vmem:[%s702 + $0xc8] sm:$0xff] %v729
                %v731 = vld [vmem:[%s701 + $0x70] sm:$0xff]
                %732 = vst [vmem:[%s702 + $0xe0] sm:$0xff] %v731
                %v733 = vld [vmem:[%s701 + $0x78] sm:$0xff]
                %734 = vst [vmem:[%s702 + $0xe8] sm:$0xff] %v733
              $region88: #{domain_attention.1} parent=82 // loop_footer
                %s700 = sadd.s32 1, %s696
              $region89: #{domain_attention.1} parent=82 // loop_footer_branch
                %695 = sbr.rel target = $region85
              $region90: #{domain_attention.1} parent=82 // loop_exit
                _
            $region83: #{domain_attention.1} parent=78 // pred_fallthru
              _
            // Predicated region
            $region91: #{domain_attention.1} parent=78 // pred_check
              _
            $region92: #{domain_attention.1} parent=78 // pred_check_branch
              %736 = sbr.rel target = $region94
            $region93: #{domain_attention.1} parent=78 // pred_region
              _
            $region94: #{domain_attention.1} parent=78 // pred_fallthru
              _
          $region79: #{domain_attention.1} parent=74 // pred_fallthru
            _
          %737 = vnop
        $region75: #{domain_attention.1} parent=66 // pred_fallthru
          _
      $region67: #{domain_attention.1} parent=5 // pred_fallthru
        _
      %p738 = scmp.le.s32.totalorder 2, %s13
      // Predicated region
      $region95: #{domain_attention.1} parent=5 // pred_check
        %p739 = pneg %p738
      $region96: #{domain_attention.1} parent=5 // pred_check_branch
        %741 = sbr.rel (%p739) target = $region98
      $region97: #{domain_attention.1} parent=5 // pred_region
        %s742 = ssub.s32 %s13, 2
        // Predicated region
        $region99: #{domain_attention.1} parent=97 // pred_check
          %p743 = pneg %p210
        $region100: #{domain_attention.1} parent=97 // pred_check_branch
          %745 = sbr.rel (%p743) target = $region102
        $region101: #{domain_attention.1} parent=97 // pred_region
          %s746 = sand.u32 %s195, 1
          %s747 = sand.u32 %s195, 1
          %s748 = smul.addr %s747, 128
          %s749 = scalar_lea.vmem [#allocation3], %s748
        $region102: #{domain_attention.1} parent=97 // pred_fallthru
          _
      $region98: #{domain_attention.1} parent=5 // pred_fallthru
        _
    $region6: #{domain_attention.1} parent=1 // loop_footer
      %s17 = sadd.s32 1, %s13
    $region7: #{domain_attention.1} parent=1 // loop_footer_branch
      %12 = sbr.rel target = $region3
    $region8: #{domain_attention.1} parent=1 // loop_exit
      _

</llo_original>
